<compile_context>
chip_gen: v7x
topology: tpu7x:2x2x1
jax: 0.10.0
libtpu: 0.0.40
codegen_flags: <defaults>
</compile_context>

<pallas_src>
import jax
import jax.numpy as jnp
from jax import lax
from jax.experimental import pallas as pl
from jax.experimental.pallas import tpu as pltpu


def _level_embed_kernel(ids_ref, tab_ref, out_ref):
    """One grid step: embed a tile of nodes, write a lane-dense (tile_n, EP) tile."""
    ids = ids_ref[...]                       # (tile_n, 3) int32, globally offset
    tile_n = ids.shape[0]
    k_pad = tab_ref.shape[0]

    # One iota + three cheap VPU compares -> multi-hot with 3 ones per row.
    iota = lax.broadcasted_iota(jnp.int32, (tile_n, k_pad), 1)
    multihot = ((ids[:, 0:1] == iota)
                | (ids[:, 1:2] == iota)
                | (ids[:, 2:3] == iota)).astype(jnp.float32)   # (tile_n, K_pad)

    # Single MXU push: K = K_pad (>=128), N = EP (multiple of 128).
    out_ref[...] = jnp.dot(multihot, tab_ref[...],
                           preferred_element_type=jnp.float32)


def build_level_tables(op_tab, sv_tab, st_tab):
    """Build the combined block-diagonal table ONCE per parameter set.

    Returns (tab[K_pad, EP] f32, id offsets per stream, out_dim=3*E).
    Hoisted out of the per-call hot path (tables are parameters).
    """
    e = op_tab.shape[1]
    assert sv_tab.shape[1] == e and st_tab.shape[1] == e
    vocabs = (op_tab.shape[0], sv_tab.shape[0], st_tab.shape[0])
    out_dim = 3 * e

    k_pad = max(128, pl.cdiv(sum(vocabs), 128) * 128)   # MXU-friendly K
    ep = max(128, pl.cdiv(out_dim, 128) * 128)          # lane-dense output width

    tab = jnp.zeros((k_pad, ep), jnp.float32)
    row = 0
    for i, t in enumerate((op_tab, sv_tab, st_tab)):
        tab = tab.at[row:row + t.shape[0], i * e:(i + 1) * e].set(
            t.astype(jnp.float32))
        row += t.shape[0]

    offs = (0, vocabs[0], vocabs[0] + vocabs[1])         # static python ints
    return tab, offs, out_dim


def _call_pallas(ids3, tab, *, tile_n, n_pad, single_buffer_table):
    k_pad, ep = tab.shape

    ids_spec = pl.BlockSpec((tile_n, 3), lambda i: (i, 0))
    if single_buffer_table:
        # Constant index_map -> table is resident; don't waste VMEM on a 2nd buffer.
        tab_spec = pl.BlockSpec((k_pad, ep), lambda i: (0, 0),
                                pipeline_mode=pl.Buffered(buffer_count=1))
    else:
        tab_spec = pl.BlockSpec((k_pad, ep), lambda i: (0, 0))
    out_spec = pl.BlockSpec((tile_n, ep), lambda i: (i, 0))

    return pl.pallas_call(
        _level_embed_kernel,
        out_shape=jax.ShapeDtypeStruct((n_pad, ep), jnp.float32),
        grid_spec=pltpu.PrefetchScalarGridSpec(
            num_scalar_prefetch=0,
            grid=(n_pad // tile_n,),
            in_specs=[ids_spec, tab_spec],
            out_specs=out_spec,
        ),
        compiler_params=pltpu.CompilerParams(
            dimension_semantics=("parallel",)),
    )(ids3, tab)


def level_embedding(op_ids, sv_ids, st_ids, tab, offs, out_dim, *, tile_n=2048):
    """Forward pass.  ids: [N] int; tab/offs/out_dim from build_level_tables.

    In production, jit this wrapper so the id packing / padding / final slice
    fuse with neighbouring ops instead of being separate HBM round-trips.
    """
    n = op_ids.shape[0]

    # Pack the three (already globally offset) id streams -> one DMA per step.
    ids3 = jnp.stack([op_ids.astype(jnp.int32) + offs[0],
                      sv_ids.astype(jnp.int32) + offs[1],
                      st_ids.astype(jnp.int32) + offs[2]], axis=1)

    # --- tiling / tail handling ----------------------------------------------
    tile_n = max(8, (int(tile_n) // 8) * 8)           # multiple of 8 sublanes
    n8 = pl.cdiv(n, 8) * 8
    tile_n = min(tile_n, n8)                          # don't exceed the graph
    if n8 >= 16:
        # Keep >= 2 parallel grid steps whenever possible (v7x: 2 TensorCores).
        half = pl.cdiv(pl.cdiv(n, 2), 8) * 8
        tile_n = min(tile_n, half)
    n_pad = pl.cdiv(n, tile_n) * tile_n
    if n_pad != n:
        # Padded tail rows get global id 0 (op-vocab row 0); sliced off below.
        ids3 = jnp.pad(ids3, ((0, n_pad - n), (0, 0)))

    try:
        out = _call_pallas(ids3, tab, tile_n=tile_n, n_pad=n_pad,
                           single_buffer_table=True)
    except Exception:
        # Fallback if pipeline_mode=pl.Buffered(1) is rejected by this jax build.
        out = _call_pallas(ids3, tab, tile_n=tile_n, n_pad=n_pad,
                           single_buffer_table=False)

    # Drop row padding and the lane padding (EP -> 3*E).
    return out[:n, :out_dim]


if __name__ == "__main__":
    # Synthetic config (stands in for ExpConfig):
    #   DatasetParams.operation_cnt = 64
    #   DatasetParams.service_cnt   = 16
    #   DatasetParams.status_cnt    = 8
    #   Model.embedding_size        = 32
    operation_cnt, service_cnt, status_cnt = 64, 16, 8
    embedding_size = 32

    key = jax.random.PRNGKey(0)
    k_op, k_sv, k_st, k_a, k_b, k_c = jax.random.split(key, 6)

    # Deterministic parameter init (like nn.Embedding default: N(0, 1)).
    op_tab = jax.random.normal(k_op, (operation_cnt, embedding_size), jnp.float32)
    sv_tab = jax.random.normal(k_sv, (service_cnt, embedding_size), jnp.float32)
    st_tab = jax.random.normal(k_st, (status_cnt, embedding_size), jnp.float32)

    # Hoisted out of the hot path: built once per parameter set.
    tab, offs, out_dim = build_level_tables(op_tab, sv_tab, st_tab)

    def run_and_check(num_nodes, seed_key):
        ki1, ki2, ki3 = jax.random.split(seed_key, 3)
        op_ids = jax.random.randint(ki1, (num_nodes,), 0, operation_cnt, jnp.int32)
        sv_ids = jax.random.randint(ki2, (num_nodes,), 0, service_cnt, jnp.int32)
        st_ids = jax.random.randint(ki3, (num_nodes,), 0, status_cnt, jnp.int32)

        feats = level_embedding(op_ids, sv_ids, st_ids, tab, offs, out_dim)
        feats = jax.block_until_ready(feats)

        ref = jnp.concatenate(
            [op_tab[op_ids], sv_tab[sv_ids], st_tab[st_ids]], axis=-1)
        assert feats.shape == (num_nodes, out_dim)
        assert jnp.allclose(feats, ref, atol=1e-5), \
            f"mismatch vs reference (n={num_nodes})"

    # g.num_nodes() = 16 (even 2-step split), 13 (tail padding), 200 (multi-tile).
    run_and_check(16, k_a)
    run_and_check(13, k_b)
    run_and_check(200, k_c)

    print("KERNEL_OK")
</pallas_src>

<mosaic_0001>
module attributes {stable_mosaic.version = 11 : i64} {
  func.func @_level_embed_kernel(%arg0: i32, %arg1: memref<8x3xi32, #tpu.memory_space<vmem>>, %arg2: memref<128x128xf32, #tpu.memory_space<vmem>>, %arg3: memref<8x128xf32, #tpu.memory_space<vmem>>) attributes {dimension_semantics = [#tpu.dimension_semantics<parallel>], iteration_bounds = array<i64: 2>, scalar_prefetch = 0 : i64, scratch_operands = 0 : i64, tpu.core_type = #tpu.core_type<tc>, window_params = [{transform_indices = @transform_0, window_bounds = array<i64: 8, 3>}, {pipeline_mode = #tpu.pipeline_mode<synchronous>, transform_indices = @transform_1, window_bounds = array<i64: 128, 128>}, {transform_indices = @transform_2, window_bounds = array<i64: 8, 128>}]} {
    %c0 = arith.constant 0 : index
    %c0_0 = arith.constant 0 : index
    %0 = vector.load %arg1[%c0, %c0_0] : memref<8x3xi32, #tpu.memory_space<vmem>>, vector<8x3xi32>
    %1 = tpu.iota {dimensions = array<i32: 1>} : vector<8x128xi32>
    %2 = vector.extract_strided_slice %0 {offsets = [0, 0], sizes = [8, 1], strides = [1, 1]} : vector<8x3xi32> to vector<8x1xi32>
    %3 = vector.broadcast %2 : vector<8x1xi32> to vector<8x128xi32>
    %4 = arith.cmpi eq, %3, %1 : vector<8x128xi32>
    %5 = vector.extract_strided_slice %0 {offsets = [0, 1], sizes = [8, 1], strides = [1, 1]} : vector<8x3xi32> to vector<8x1xi32>
    %6 = vector.broadcast %5 : vector<8x1xi32> to vector<8x128xi32>
    %7 = arith.cmpi eq, %6, %1 : vector<8x128xi32>
    %8 = arith.ori %4, %7 : vector<8x128xi1>
    %9 = vector.extract_strided_slice %0 {offsets = [0, 2], sizes = [8, 1], strides = [1, 1]} : vector<8x3xi32> to vector<8x1xi32>
    %10 = vector.broadcast %9 : vector<8x1xi32> to vector<8x128xi32>
    %11 = arith.cmpi eq, %10, %1 : vector<8x128xi32>
    %12 = arith.ori %8, %11 : vector<8x128xi1>
    %13 = arith.extui %12 : vector<8x128xi1> to vector<8x128xi32>
    %14 = arith.sitofp %13 : vector<8x128xi32> to vector<8x128xf32>
    %c0_1 = arith.constant 0 : index
    %c0_2 = arith.constant 0 : index
    %15 = vector.load %arg2[%c0_1, %c0_2] : memref<128x128xf32, #tpu.memory_space<vmem>>, vector<128x128xf32>
    %cst = arith.constant dense<0.000000e+00> : vector<8x128xf32>
    %16 = tpu.matmul %14, %15, %cst {dimension_numbers = #tpu.dot_dimension_numbers<[1], [0], [0], [1], [0, 0, 1, 1], [], []>} : vector<8x128xf32>, vector<128x128xf32>, vector<8x128xf32> -> vector<8x128xf32>
    %c0_3 = arith.constant 0 : index
    %c0_4 = arith.constant 0 : index
    %17 = vector.load %arg3[%c0_3, %c0_4] : memref<8x128xf32, #tpu.memory_space<vmem>>, vector<8x128xf32>
    tpu.vector_store %arg3[%c0_3, %c0_4], %16 {strides = array<i32>} : memref<8x128xf32, #tpu.memory_space<vmem>>, vector<8x128xf32>,
    return
  }
  func.func @transform_0(%arg0: i32) -> (i32, i32) {
    %c0_i32 = arith.constant 0 : i32
    %c0_i32_0 = arith.constant 0 : i32
    return %arg0, %c0_i32 : i32, i32
  }
  func.func @transform_1(%arg0: i32) -> (i32, i32) {
    %c0_i32 = arith.constant 0 : i32
    %c0_i32_0 = arith.constant 0 : i32
    %c0_i32_1 = arith.constant 0 : i32
    return %c0_i32, %c0_i32_0 : i32, i32
  }
  func.func @transform_2(%arg0: i32) -> (i32, i32) {
    %c0_i32 = arith.constant 0 : i32
    %c0_i32_0 = arith.constant 0 : i32
    return %arg0, %c0_i32 : i32, i32
  }
}

module attributes {stable_mosaic.version = 11 : i64} {
  func.func @_level_embed_kernel(%arg0: i32, %arg1: memref<8x3xi32, #tpu.memory_space<vmem>>, %arg2: memref<128x128xf32, #tpu.memory_space<vmem>>, %arg3: memref<8x128xf32, #tpu.memory_space<vmem>>) attributes {dimension_semantics = [#tpu.dimension_semantics<parallel>], iteration_bounds = array<i64: 2>, scalar_prefetch = 0 : i64, scratch_operands = 0 : i64, tpu.core_type = #tpu.core_type<tc>, window_params = [{transform_indices = @transform_0, window_bounds = array<i64: 8, 3>}, {pipeline_mode = #tpu.pipeline_mode<synchronous>, transform_indices = @transform_1, window_bounds = array<i64: 128, 128>}, {transform_indices = @transform_2, window_bounds = array<i64: 8, 128>}]} {
    %c0 = arith.constant 0 : index
    %c0_0 = arith.constant 0 : index
    %0 = vector.load %arg1[%c0, %c0_0] : memref<8x3xi32, #tpu.memory_space<vmem>>, vector<8x3xi32>
    %1 = tpu.iota {dimensions = array<i32: 1>} : vector<8x128xi32>
    %2 = vector.extract_strided_slice %0 {offsets = [0, 0], sizes = [8, 1], strides = [1, 1]} : vector<8x3xi32> to vector<8x1xi32>
    %3 = vector.broadcast %2 : vector<8x1xi32> to vector<8x128xi32>
    %4 = arith.cmpi eq, %3, %1 : vector<8x128xi32>
    %5 = vector.extract_strided_slice %0 {offsets = [0, 1], sizes = [8, 1], strides = [1, 1]} : vector<8x3xi32> to vector<8x1xi32>
    %6 = vector.broadcast %5 : vector<8x1xi32> to vector<8x128xi32>
    %7 = arith.cmpi eq, %6, %1 : vector<8x128xi32>
    %8 = arith.ori %4, %7 : vector<8x128xi1>
    %9 = vector.extract_strided_slice %0 {offsets = [0, 2], sizes = [8, 1], strides = [1, 1]} : vector<8x3xi32> to vector<8x1xi32>
    %10 = vector.broadcast %9 : vector<8x1xi32> to vector<8x128xi32>
    %11 = arith.cmpi eq, %10, %1 : vector<8x128xi32>
    %12 = arith.ori %8, %11 : vector<8x128xi1>
    %13 = arith.extui %12 : vector<8x128xi1> to vector<8x128xi32>
    %14 = arith.sitofp %13 : vector<8x128xi32> to vector<8x128xf32>
    %c0_1 = arith.constant 0 : index
    %c0_2 = arith.constant 0 : index
    %15 = vector.load %arg2[%c0_1, %c0_2] : memref<128x128xf32, #tpu.memory_space<vmem>>, vector<128x128xf32>
    %cst = arith.constant dense<0.000000e+00> : vector<8x128xf32>
    %16 = tpu.matmul %14, %15, %cst {dimension_numbers = #tpu.dot_dimension_numbers<[1], [0], [0], [1], [0, 0, 1, 1], [], []>} : vector<8x128xf32>, vector<128x128xf32>, vector<8x128xf32> -> vector<8x128xf32>
    %c0_3 = arith.constant 0 : index
    %c0_4 = arith.constant 0 : index
    %17 = vector.load %arg3[%c0_3, %c0_4] : memref<8x128xf32, #tpu.memory_space<vmem>>, vector<8x128xf32>
    tpu.vector_store %arg3[%c0_3, %c0_4], %16 {strides = array<i32>} : memref<8x128xf32, #tpu.memory_space<vmem>>, vector<8x128xf32>,
    return
  }
  func.func @transform_0(%arg0: i32) -> (i32, i32) {
    %c0_i32 = arith.constant 0 : i32
    %c0_i32_0 = arith.constant 0 : i32
    return %arg0, %c0_i32 : i32, i32
  }
  func.func @transform_1(%arg0: i32) -> (i32, i32) {
    %c0_i32 = arith.constant 0 : i32
    %c0_i32_0 = arith.constant 0 : i32
    %c0_i32_1 = arith.constant 0 : i32
    return %c0_i32, %c0_i32_0 : i32, i32
  }
  func.func @transform_2(%arg0: i32) -> (i32, i32) {
    %c0_i32 = arith.constant 0 : i32
    %c0_i32_0 = arith.constant 0 : i32
    return %arg0, %c0_i32 : i32, i32
  }
}

</mosaic_0001>

<llo_original>
// kernel: tpu_custom_call.1
$region0: #{tpu_custom_call.1}
  #allocation0 [shape = 'u32[]', space=smem, size = 0x4, offset = 0x4, fixed_abs, tag = 'smem constant byte address 0x4 - core index']
  #allocation1 [shape = 'u32[144,128]{1,0:T(1,128)}', space=vmem, size = 0x12000, scoped, tag = 'internal scratch']
  %s0 = inlined_call_operand.vmem [shape: s32[16,3], index: 0, kind: input, shape index: {}]
  %s1 = inlined_call_operand.hbm [shape: f32[128,128], index: 1, kind: input, shape index: {}]
  %s2 = inlined_call_operand.hbm [shape: f32[16,128], index: 2, kind: output, shape index: {}]
  %s3 = sld [smem:[#allocation0]]
  $region45: #{tpu_custom_call.1} parent=0
    _
  %s5 = ssub.s32 1, %s3
  %s6 = scalar_select 0, %s5, %s3
  $region1: #{tpu_custom_call.1} parent=0
    #allocation2 [shape = 'u8[65536]{0}', space=vmem, size = 0x10000, scoped, tag = 'input window, operand 1, single buffered']
    #allocation3 [shape = 's32[2]{0}', space=sflag, size = 0x8, scoped, tag = 'scoped memory for tpu_custom_call.1']
    #allocation4 [shape = 's32[2]{0}', space=sflag, size = 0x8, scoped, tag = 'scoped memory for tpu_custom_call.1']
    #allocation5 [shape = 'u8[8192]{0}', space=vmem, size = 0x2000, scoped, tag = 'output window, operand 0']
    %7 = vsyncpa [#allocation3], 0
    %8 = vsyncpa [#allocation4], 0
    %s9 = scalar_lea.sflag [#allocation4], 1
    %10 = vsyncpa %s9, 0
    loop: start=0, step=1, limit=4
    $region2: #{tpu_custom_call.1} parent=1 // loop_pre_header
      _
    $region3: #{tpu_custom_call.1} parent=1 // loop_header
      %s12 = sphi 0, %s16
      %p13 = scmp.ge.s32.totalorder %s12, 4
      %s22 = sphi 0, %s24
      %s25 = sphi 0, %s22
      %s26 = sphi 0, %s25
      %s42 = sphi 0, %s26
      %s46 = sphi 0, %s46
      %s48 = sphi 0, %s46
      %s49 = sphi 0, %s48
      %s63 = sphi 0, %s49
      %s69 = sphi 0, %s71
      %s72 = sphi 0, %s69
      %s73 = sphi 0, %s72
      %s89 = sphi 0, %s73
    $region4: #{tpu_custom_call.1} parent=1 // loop_header_branch
      %15 = sbr.rel (%p13) target = $region8
    $region5: #{tpu_custom_call.1} parent=1 // loop_body
      %s17 = ssub.s32 %s12, 1
      %s18 = ssub.s32 %s12, 2
      %s19 = sadd.s32 %s12, 1
      %s20 = ssub.s32 %s12, %s19
      %p21 = scmp.eq.s32.totalorder %s20, 0
      %s23 = sadd.s32 %s22, 1
      %s24 = scalar_select %p21, %s22, %s23
      %p27 = pneg %p21
      %p28 = scmp.eq.s32.totalorder %s12, 1
      %p29 = por %p27, %p28
      %p30 = scmp.ne.s32.totalorder %s22, %s25
      %p31 = scmp.eq.s32.totalorder %s12, 0
      %p32 = por %p30, %p31
      %p33 = scmp.ne.s32.totalorder %s22, %s25
      %p34 = scmp.eq.s32.totalorder %s17, 1
      %p35 = por %p33, %p34
      %p36 = scmp.ne.s32.totalorder %s25, %s26
      %p37 = scmp.eq.s32.totalorder %s17, 0
      %p38 = por %p36, %p37
      %p39 = scmp.ne.s32.totalorder %s25, %s26
      %p40 = scmp.eq.s32.totalorder %s18, 1
      %p41 = por %p39, %p40
      %p43 = scmp.ne.s32.totalorder %s26, %s42
      %p44 = scmp.eq.s32.totalorder %s18, 0
      %p45 = por %p43, %p44
      %s47 = sadd.s32 %s46, 1
      %p50 = scmp.eq.s32.totalorder %s12, 1
      %p51 = scmp.ne.s32.totalorder %s46, %s48
      %p52 = scmp.eq.s32.totalorder %s12, 0
      %p53 = por %p51, %p52
      %p54 = scmp.ne.s32.totalorder %s46, %s48
      %p55 = scmp.eq.s32.totalorder %s17, 1
      %p56 = por %p54, %p55
      %p57 = scmp.ne.s32.totalorder %s48, %s49
      %p58 = scmp.eq.s32.totalorder %s17, 0
      %p59 = por %p57, %p58
      %p60 = scmp.ne.s32.totalorder %s48, %s49
      %p61 = scmp.eq.s32.totalorder %s18, 1
      %p62 = por %p60, %p61
      %p64 = scmp.ne.s32.totalorder %s49, %s63
      %p65 = scmp.eq.s32.totalorder %s18, 0
      %p66 = por %p64, %p65
      %s67 = ssub.s32 %s12, %s19
      %p68 = scmp.eq.s32.totalorder %s67, 0
      %s70 = sadd.s32 %s69, 1
      %s71 = scalar_select %p68, %s69, %s70
      %p74 = pneg %p68
      %p75 = scmp.eq.s32.totalorder %s12, 1
      %p76 = por %p74, %p75
      %p77 = scmp.ne.s32.totalorder %s69, %s72
      %p78 = scmp.eq.s32.totalorder %s12, 0
      %p79 = por %p77, %p78
      %p80 = scmp.ne.s32.totalorder %s69, %s72
      %p81 = scmp.eq.s32.totalorder %s17, 1
      %p82 = por %p80, %p81
      %p83 = scmp.ne.s32.totalorder %s72, %s73
      %p84 = scmp.eq.s32.totalorder %s17, 0
      %p85 = por %p83, %p84
      %p86 = scmp.ne.s32.totalorder %s72, %s73
      %p87 = scmp.eq.s32.totalorder %s18, 1
      %p88 = por %p86, %p87
      %p90 = scmp.ne.s32.totalorder %s73, %s89
      %p91 = scmp.eq.s32.totalorder %s18, 0
      %p92 = por %p90, %p91
      %p93 = scmp.le.s32.totalorder 1, %s12
      %p94 = scmp.lt.s32.totalorder %s12, 3
      %p95 = pnand %p93, %p94
      %p96 = pneg %p95
      // Predicated region
      $region9: #{tpu_custom_call.1} parent=5 // pred_check
        _
      $region10: #{tpu_custom_call.1} parent=5 // pred_check_branch
        %98 = sbr.rel (%p95) target = $region12
      $region11: #{tpu_custom_call.1} parent=5 // pred_region
        %s99 = ssub.s32 %s12, 1
        // Predicated region
        $region13: #{tpu_custom_call.1} parent=11 // pred_check
          %p100 = pneg %p59
        $region14: #{tpu_custom_call.1} parent=11 // pred_check_branch
          %102 = sbr.rel (%p100) target = $region16
        $region15: #{tpu_custom_call.1} parent=11 // pred_region
          %s104 = ssub.s32 2048, 2048
          %105 = vsyncadd [#allocation3], %s104
          %s106 = sshll.u32 [#allocation2], 4
          %s107 = int_to_ptr.vmem [resolvable:$true] %s106
          %112 = dma.hbm_to_vmem [thread:$0]  %s1, 2048, %s107, [#allocation3], 128, 128, 8
        $region16: #{tpu_custom_call.1} parent=11 // pred_fallthru
          _
      $region12: #{tpu_custom_call.1} parent=5 // pred_fallthru
        _
      %p113 = scmp.lt.s32.totalorder %s12, 2
      // Predicated region
      $region17: #{tpu_custom_call.1} parent=5 // pred_check
        %p114 = pneg %p113
      $region18: #{tpu_custom_call.1} parent=5 // pred_check_branch
        %116 = sbr.rel (%p114) target = $region20
      $region19: #{tpu_custom_call.1} parent=5 // pred_region
        // Predicated region
        $region21: #{tpu_custom_call.1} parent=19 // pred_check
          %p117 = pneg %p32
        $region22: #{tpu_custom_call.1} parent=19 // pred_check_branch
          %119 = sbr.rel (%p117) target = $region24
        $region23: #{tpu_custom_call.1} parent=19 // pred_region
          %p120 = scmp.lt.s32.totalorder %s12, 1
          %s121 = scalar_select %p120, %s12, 1
          %s122 = smul.addr %s121, 8
          %s123 = scalar_lea.vmem %s0, %s122
        $region24: #{tpu_custom_call.1} parent=19 // pred_fallthru
          _
      $region20: #{tpu_custom_call.1} parent=5 // pred_fallthru
        _
      %p124 = scmp.le.s32.totalorder 1, %s12
      %p125 = scmp.lt.s32.totalorder %s12, 3
      %p126 = pnand %p124, %p125
      %p127 = pneg %p126
      // Predicated region
      $region25: #{tpu_custom_call.1} parent=5 // pred_check
        _
      $region26: #{tpu_custom_call.1} parent=5 // pred_check_branch
        %129 = sbr.rel (%p126) target = $region28
      $region27: #{tpu_custom_call.1} parent=5 // pred_region
        %s130 = ssub.s32 %s12, 1
        // Predicated region
        $region29: #{tpu_custom_call.1} parent=27 // pred_check
          %p131 = pneg %p59
        $region30: #{tpu_custom_call.1} parent=27 // pred_check_branch
          %133 = sbr.rel (%p131) target = $region32
        $region31: #{tpu_custom_call.1} parent=27 // pred_region
          %134 = dma.done [#allocation3], 2048
        $region32: #{tpu_custom_call.1} parent=27 // pred_fallthru
          _
        %p135 = scmp.lt.s32.totalorder %s17, 1
        %s136 = scalar_select %p135, %s17, 1
        %s137 = smul.addr %s136, 8
        %s138 = scalar_lea.vmem %s0, %s137
        %p139 = pneg %p38
        %p140 = pneg %p35
        %p141 = pneg %p59
        %p142 = pneg %p56
        %p143 = pneg %p85
        %p144 = pneg %p82
        %s145 = sand.u32 %s72, 1
        %s146 = scalar_lea.sflag [#allocation4], %s145
        %s147 = sand.u32 %s72, 1
        %s148 = smul.addr %s147, 8
        %s149 = scalar_lea.vmem [#allocation5], %s148
        %p150 = scmp.lt.s32.totalorder %s17, 1
        %s151 = scalar_select %p150, %s17, 1
        %s152 = smul.addr %s151, 8
        %s153 = scalar_lea.vmem %s0, %s152
        %v154 = vld [vmem:[%s153] sm:$0xff]
        %v155 = vlaneseq
        %v156 = vand.u32 %v155, 127
        %157 = vset.pattern.permute.xlu0 0
        %158 = vperm.xlu0 %157, %v154
        %v159 = vpop.permute.xlu0 %158
        %vm160 = vcmp.eq.s32.totalorder %v159, %v156
        %161 = vset.pattern.permute.xlu0 1
        %162 = vperm.xlu0 %161, %v154
        %v163 = vpop.permute.xlu0 %162
        %vm164 = vcmp.eq.s32.totalorder %v163, %v156
        %vm165 = vmor %vm160, %vm164
        %166 = vset.pattern.permute.xlu0 2
        %167 = vperm.xlu0 %166, %v154
        %v168 = vpop.permute.xlu0 %167
        %vm169 = vcmp.eq.s32.totalorder %v168, %v156
        %vm170 = vmor %vm165, %vm169
        %v171 = vsel %vm170, 1, 0
        %v172 = vcvt.s32.f32 %v171
        %v173 = vld [vmem:[#allocation2] sm:$0xff]
        %v174 = vld [vmem:[#allocation2 + $0x8] sm:$0xff]
        %v175 = vld [vmem:[#allocation2 + $0x10] sm:$0xff]
        %v176 = vld [vmem:[#allocation2 + $0x18] sm:$0xff]
        %v177 = vld [vmem:[#allocation2 + $0x20] sm:$0xff]
        %v178 = vld [vmem:[#allocation2 + $0x28] sm:$0xff]
        %v179 = vld [vmem:[#allocation2 + $0x30] sm:$0xff]
        %v180 = vld [vmem:[#allocation2 + $0x38] sm:$0xff]
        %v181 = vld [vmem:[#allocation2 + $0x40] sm:$0xff]
        %v182 = vld [vmem:[#allocation2 + $0x48] sm:$0xff]
        %v183 = vld [vmem:[#allocation2 + $0x50] sm:$0xff]
        %v184 = vld [vmem:[#allocation2 + $0x58] sm:$0xff]
        %v185 = vld [vmem:[#allocation2 + $0x60] sm:$0xff]
        %v186 = vld [vmem:[#allocation2 + $0x68] sm:$0xff]
        %v187 = vld [vmem:[#allocation2 + $0x70] sm:$0xff]
        %v188 = vld [vmem:[#allocation2 + $0x78] sm:$0xff]
        %189 = vmatprep.subr.mxu0 0.0
        %190 = vmatpush1.msra.mxu0 %v173
        %191 = vmatprep.subr.mxu0 0.0
        %192 = vmatpush1.msra.mxu0 %v174
        %193 = vmatprep.subr.mxu0 0.0
        %194 = vmatpush1.msra.mxu0 %v175
        %195 = vmatprep.subr.mxu0 0.0
        %196 = vmatpush1.msra.mxu0 %v176
        %197 = vmatprep.subr.mxu0 0.0
        %198 = vmatpush1.msra.mxu0 %v177
        %199 = vmatprep.subr.mxu0 0.0
        %200 = vmatpush1.msra.mxu0 %v178
        %201 = vmatprep.subr.mxu0 0.0
        %202 = vmatpush1.msra.mxu0 %v179
        %203 = vmatprep.subr.mxu0 0.0
        %204 = vmatpush1.msra.mxu0 %v180
        %205 = vmatprep.subr.mxu0 0.0
        %206 = vmatpush1.msra.mxu0 %v181
        %207 = vmatprep.subr.mxu0 0.0
        %208 = vmatpush1.msra.mxu0 %v182
        %209 = vmatprep.subr.mxu0 0.0
        %210 = vmatpush1.msra.mxu0 %v183
        %211 = vmatprep.subr.mxu0 0.0
        %212 = vmatpush1.msra.mxu0 %v184
        %213 = vmatprep.subr.mxu0 0.0
        %214 = vmatpush1.msra.mxu0 %v185
        %215 = vmatprep.subr.mxu0 0.0
        %216 = vmatpush1.msra.mxu0 %v186
        %217 = vmatprep.subr.mxu0 0.0
        %218 = vmatpush1.msra.mxu0 %v187
        %219 = vmatprep.subr.mxu0 0.0
        %220 = vmatpush1.msra.mxu0 %v188
        %221 = vmatprep.subr.mxu0 0.0
        %222 = vmatpush1.msra.mxu0 0.0
        %223 = vmatprep.subr.mxu0 0.0
        %224 = vmatpush1.msra.mxu0 0.0
        %225 = vmatprep.subr.mxu0 0.0
        %226 = vmatpush1.msra.mxu0 0.0
        %227 = vmatprep.subr.mxu0 0.0
        %228 = vmatpush1.msra.mxu0 0.0
        %229 = vmatprep.subr.mxu0 0.0
        %230 = vmatpush1.msra.mxu0 0.0
        %231 = vmatprep.subr.mxu0 0.0
        %232 = vmatpush1.msra.mxu0 0.0
        %233 = vmatprep.subr.mxu0 0.0
        %234 = vmatpush1.msra.mxu0 0.0
        %235 = vmatprep.subr.mxu0 0.0
        %236 = vmatpush1.msra.mxu0 0.0
        %237 = vmatprep.subr.mxu0 0.0
        %238 = vmatpush1.msra.mxu0 0.0
        %239 = vmatprep.subr.mxu0 0.0
        %240 = vmatpush1.msra.mxu0 0.0
        %241 = vmatprep.subr.mxu0 0.0
        %242 = vmatpush1.msra.mxu0 0.0
        %243 = vmatprep.subr.mxu0 0.0
        %244 = vmatpush1.msra.mxu0 0.0
        %245 = vmatprep.subr.mxu0 0.0
        %246 = vmatpush1.msra.mxu0 0.0
        %247 = vmatprep.subr.mxu0 0.0
        %248 = vmatpush1.msra.mxu0 0.0
        %249 = vmatprep.subr.mxu0 0.0
        %250 = vmatpush1.msra.mxu0 0.0
        %251 = vmatprep.subr.mxu0 0.0
        %252 = vmatpush1.msra.mxu0 0.0
        %253 = vmatprep.mubr.f32.mxu0 0.0
        %254 = vmatmul.mubr.f32.gmra.mrb[0].mxu0 %v172
        %v255 = vpop.f32.mrb[0].mxu0
        %v256 = vadd.f32 0.0, %v255
        %v257 = vpop.f32.mrb[0].mxu0
        %258 = vdwg.mxu0
        %259 = vst [vmem:[%s149] sm:$0xff] %v256
        %s260 = sand.u32 %s72, 1
        %s261 = scalar_lea.sflag [#allocation4], %s260
        %s262 = sand.u32 %s72, 1
        %s263 = smul.addr %s262, 8
        %s264 = scalar_lea.vmem [#allocation5], %s263
        // Predicated region
        $region33: #{tpu_custom_call.1} parent=27 // pred_check
          %p265 = pneg %p82
        $region34: #{tpu_custom_call.1} parent=27 // pred_check_branch
          %267 = sbr.rel (%p265) target = $region36
        $region35: #{tpu_custom_call.1} parent=27 // pred_region
          %s269 = ssub.s32 128, 128
          %270 = vsyncadd %s261, %s269
          %s271 = smul.addr %s17, 128
          %s272 = scalar_lea.hbm %s2, %s271
          %s274 = sshll.u32 %s264, 4
          %s275 = int_to_ptr.vmem [resolvable:$true] %s274
          %277 = dma.vmem_to_hbm [thread:$0]  %s275, 128, %s272, %s261
        $region36: #{tpu_custom_call.1} parent=27 // pred_fallthru
          _
      $region28: #{tpu_custom_call.1} parent=5 // pred_fallthru
        _
      %p278 = scmp.le.s32.totalorder 2, %s12
      // Predicated region
      $region37: #{tpu_custom_call.1} parent=5 // pred_check
        %p279 = pneg %p278
      $region38: #{tpu_custom_call.1} parent=5 // pred_check_branch
        %281 = sbr.rel (%p279) target = $region40
      $region39: #{tpu_custom_call.1} parent=5 // pred_region
        %s282 = ssub.s32 %s12, 2
        // Predicated region
        $region41: #{tpu_custom_call.1} parent=39 // pred_check
          %p283 = pneg %p88
        $region42: #{tpu_custom_call.1} parent=39 // pred_check_branch
          %285 = sbr.rel (%p283) target = $region44
        $region43: #{tpu_custom_call.1} parent=39 // pred_region
          %s286 = sand.u32 %s73, 1
          %s287 = scalar_lea.sflag [#allocation4], %s286
          %s288 = sand.u32 %s73, 1
          %s289 = smul.addr %s288, 8
          %s290 = scalar_lea.vmem [#allocation5], %s289
          %291 = dma.done %s287, 128
        $region44: #{tpu_custom_call.1} parent=39 // pred_fallthru
          _
      $region40: #{tpu_custom_call.1} parent=5 // pred_fallthru
        _
    $region6: #{tpu_custom_call.1} parent=1 // loop_footer
      %s16 = sadd.s32 1, %s12
    $region7: #{tpu_custom_call.1} parent=1 // loop_footer_branch
      %11 = sbr.rel target = $region3
    $region8: #{tpu_custom_call.1} parent=1 // loop_exit
      _
    %292 = vsyncpa [#allocation3], 1
    %s293 = scalar_lea.sflag [#allocation3], 1
    %294 = vsyncpa %s293, 1
    %295 = vsyncpa [#allocation4], 1
    %s296 = scalar_lea.sflag [#allocation4], 1
    %297 = vsyncpa %s296, 1

// kernel: tpu_custom_call.1
$region0: #{tpu_custom_call.1}
  #allocation0 [shape = 'u32[]', space=smem, size = 0x4, offset = 0x4, fixed_abs, tag = 'smem constant byte address 0x4 - core index']
  #allocation1 [shape = 'u32[144,128]{1,0:T(1,128)}', space=vmem, size = 0x12000, scoped, tag = 'internal scratch']
  %s0 = inlined_call_operand.vmem [shape: s32[16,3], index: 0, kind: input, shape index: {}]
  %s1 = inlined_call_operand.hbm [shape: f32[128,128], index: 1, kind: input, shape index: {}]
  %s2 = inlined_call_operand.hbm [shape: f32[16,128], index: 2, kind: output, shape index: {}]
  %s3 = sld [smem:[#allocation0]]
  $region45: #{tpu_custom_call.1} parent=0
    _
  %s5 = ssub.s32 1, %s3
  %s6 = scalar_select 0, %s5, %s3
  $region1: #{tpu_custom_call.1} parent=0
    #allocation2 [shape = 'u8[65536]{0}', space=vmem, size = 0x10000, scoped, tag = 'input window, operand 1, single buffered']
    #allocation3 [shape = 's32[2]{0}', space=sflag, size = 0x8, scoped, tag = 'scoped memory for tpu_custom_call.1']
    #allocation4 [shape = 's32[2]{0}', space=sflag, size = 0x8, scoped, tag = 'scoped memory for tpu_custom_call.1']
    #allocation5 [shape = 'u8[8192]{0}', space=vmem, size = 0x2000, scoped, tag = 'output window, operand 0']
    %7 = vsyncpa [#allocation3], 0
    %8 = vsyncpa [#allocation4], 0
    %s9 = scalar_lea.sflag [#allocation4], 1
    %10 = vsyncpa %s9, 0
    loop: start=0, step=1, limit=4
    $region2: #{tpu_custom_call.1} parent=1 // loop_pre_header
      _
    $region3: #{tpu_custom_call.1} parent=1 // loop_header
      %s12 = sphi 0, %s16
      %p13 = scmp.ge.s32.totalorder %s12, 4
      %s22 = sphi 0, %s24
      %s25 = sphi 0, %s22
      %s26 = sphi 0, %s25
      %s42 = sphi 0, %s26
      %s46 = sphi 0, %s46
      %s48 = sphi 0, %s46
      %s49 = sphi 0, %s48
      %s63 = sphi 0, %s49
      %s69 = sphi 0, %s71
      %s72 = sphi 0, %s69
      %s73 = sphi 0, %s72
      %s89 = sphi 0, %s73
    $region4: #{tpu_custom_call.1} parent=1 // loop_header_branch
      %15 = sbr.rel (%p13) target = $region8
    $region5: #{tpu_custom_call.1} parent=1 // loop_body
      %s17 = ssub.s32 %s12, 1
      %s18 = ssub.s32 %s12, 2
      %s19 = sadd.s32 %s12, 1
      %s20 = ssub.s32 %s12, %s19
      %p21 = scmp.eq.s32.totalorder %s20, 0
      %s23 = sadd.s32 %s22, 1
      %s24 = scalar_select %p21, %s22, %s23
      %p27 = pneg %p21
      %p28 = scmp.eq.s32.totalorder %s12, 1
      %p29 = por %p27, %p28
      %p30 = scmp.ne.s32.totalorder %s22, %s25
      %p31 = scmp.eq.s32.totalorder %s12, 0
      %p32 = por %p30, %p31
      %p33 = scmp.ne.s32.totalorder %s22, %s25
      %p34 = scmp.eq.s32.totalorder %s17, 1
      %p35 = por %p33, %p34
      %p36 = scmp.ne.s32.totalorder %s25, %s26
      %p37 = scmp.eq.s32.totalorder %s17, 0
      %p38 = por %p36, %p37
      %p39 = scmp.ne.s32.totalorder %s25, %s26
      %p40 = scmp.eq.s32.totalorder %s18, 1
      %p41 = por %p39, %p40
      %p43 = scmp.ne.s32.totalorder %s26, %s42
      %p44 = scmp.eq.s32.totalorder %s18, 0
      %p45 = por %p43, %p44
      %s47 = sadd.s32 %s46, 1
      %p50 = scmp.eq.s32.totalorder %s12, 1
      %p51 = scmp.ne.s32.totalorder %s46, %s48
      %p52 = scmp.eq.s32.totalorder %s12, 0
      %p53 = por %p51, %p52
      %p54 = scmp.ne.s32.totalorder %s46, %s48
      %p55 = scmp.eq.s32.totalorder %s17, 1
      %p56 = por %p54, %p55
      %p57 = scmp.ne.s32.totalorder %s48, %s49
      %p58 = scmp.eq.s32.totalorder %s17, 0
      %p59 = por %p57, %p58
      %p60 = scmp.ne.s32.totalorder %s48, %s49
      %p61 = scmp.eq.s32.totalorder %s18, 1
      %p62 = por %p60, %p61
      %p64 = scmp.ne.s32.totalorder %s49, %s63
      %p65 = scmp.eq.s32.totalorder %s18, 0
      %p66 = por %p64, %p65
      %s67 = ssub.s32 %s12, %s19
      %p68 = scmp.eq.s32.totalorder %s67, 0
      %s70 = sadd.s32 %s69, 1
      %s71 = scalar_select %p68, %s69, %s70
      %p74 = pneg %p68
      %p75 = scmp.eq.s32.totalorder %s12, 1
      %p76 = por %p74, %p75
      %p77 = scmp.ne.s32.totalorder %s69, %s72
      %p78 = scmp.eq.s32.totalorder %s12, 0
      %p79 = por %p77, %p78
      %p80 = scmp.ne.s32.totalorder %s69, %s72
      %p81 = scmp.eq.s32.totalorder %s17, 1
      %p82 = por %p80, %p81
      %p83 = scmp.ne.s32.totalorder %s72, %s73
      %p84 = scmp.eq.s32.totalorder %s17, 0
      %p85 = por %p83, %p84
      %p86 = scmp.ne.s32.totalorder %s72, %s73
      %p87 = scmp.eq.s32.totalorder %s18, 1
      %p88 = por %p86, %p87
      %p90 = scmp.ne.s32.totalorder %s73, %s89
      %p91 = scmp.eq.s32.totalorder %s18, 0
      %p92 = por %p90, %p91
      %p93 = scmp.le.s32.totalorder 1, %s12
      %p94 = scmp.lt.s32.totalorder %s12, 3
      %p95 = pnand %p93, %p94
      %p96 = pneg %p95
      // Predicated region
      $region9: #{tpu_custom_call.1} parent=5 // pred_check
        _
      $region10: #{tpu_custom_call.1} parent=5 // pred_check_branch
        %98 = sbr.rel (%p95) target = $region12
      $region11: #{tpu_custom_call.1} parent=5 // pred_region
        %s99 = ssub.s32 %s12, 1
        // Predicated region
        $region13: #{tpu_custom_call.1} parent=11 // pred_check
          %p100 = pneg %p59
        $region14: #{tpu_custom_call.1} parent=11 // pred_check_branch
          %102 = sbr.rel (%p100) target = $region16
        $region15: #{tpu_custom_call.1} parent=11 // pred_region
          %s104 = ssub.s32 2048, 2048
          %105 = vsyncadd [#allocation3], %s104
          %s106 = sshll.u32 [#allocation2], 4
          %s107 = int_to_ptr.vmem [resolvable:$true] %s106
          %112 = dma.hbm_to_vmem [thread:$0]  %s1, 2048, %s107, [#allocation3], 128, 128, 8
        $region16: #{tpu_custom_call.1} parent=11 // pred_fallthru
          _
      $region12: #{tpu_custom_call.1} parent=5 // pred_fallthru
        _
      %p113 = scmp.lt.s32.totalorder %s12, 2
      // Predicated region
      $region17: #{tpu_custom_call.1} parent=5 // pred_check
        %p114 = pneg %p113
      $region18: #{tpu_custom_call.1} parent=5 // pred_check_branch
        %116 = sbr.rel (%p114) target = $region20
      $region19: #{tpu_custom_call.1} parent=5 // pred_region
        // Predicated region
        $region21: #{tpu_custom_call.1} parent=19 // pred_check
          %p117 = pneg %p32
        $region22: #{tpu_custom_call.1} parent=19 // pred_check_branch
          %119 = sbr.rel (%p117) target = $region24
        $region23: #{tpu_custom_call.1} parent=19 // pred_region
          %p120 = scmp.lt.s32.totalorder %s12, 1
          %s121 = scalar_select %p120, %s12, 1
          %s122 = smul.addr %s121, 8
          %s123 = scalar_lea.vmem %s0, %s122
        $region24: #{tpu_custom_call.1} parent=19 // pred_fallthru
          _
      $region20: #{tpu_custom_call.1} parent=5 // pred_fallthru
        _
      %p124 = scmp.le.s32.totalorder 1, %s12
      %p125 = scmp.lt.s32.totalorder %s12, 3
      %p126 = pnand %p124, %p125
      %p127 = pneg %p126
      // Predicated region
      $region25: #{tpu_custom_call.1} parent=5 // pred_check
        _
      $region26: #{tpu_custom_call.1} parent=5 // pred_check_branch
        %129 = sbr.rel (%p126) target = $region28
      $region27: #{tpu_custom_call.1} parent=5 // pred_region
        %s130 = ssub.s32 %s12, 1
        // Predicated region
        $region29: #{tpu_custom_call.1} parent=27 // pred_check
          %p131 = pneg %p59
        $region30: #{tpu_custom_call.1} parent=27 // pred_check_branch
          %133 = sbr.rel (%p131) target = $region32
        $region31: #{tpu_custom_call.1} parent=27 // pred_region
          %134 = dma.done [#allocation3], 2048
        $region32: #{tpu_custom_call.1} parent=27 // pred_fallthru
          _
        %p135 = scmp.lt.s32.totalorder %s17, 1
        %s136 = scalar_select %p135, %s17, 1
        %s137 = smul.addr %s136, 8
        %s138 = scalar_lea.vmem %s0, %s137
        %p139 = pneg %p38
        %p140 = pneg %p35
        %p141 = pneg %p59
        %p142 = pneg %p56
        %p143 = pneg %p85
        %p144 = pneg %p82
        %s145 = sand.u32 %s72, 1
        %s146 = scalar_lea.sflag [#allocation4], %s145
        %s147 = sand.u32 %s72, 1
        %s148 = smul.addr %s147, 8
        %s149 = scalar_lea.vmem [#allocation5], %s148
        %p150 = scmp.lt.s32.totalorder %s17, 1
        %s151 = scalar_select %p150, %s17, 1
        %s152 = smul.addr %s151, 8
        %s153 = scalar_lea.vmem %s0, %s152
        %v154 = vld [vmem:[%s153] sm:$0xff]
        %v155 = vlaneseq
        %v156 = vand.u32 %v155, 127
        %157 = vset.pattern.permute.xlu0 0
        %158 = vperm.xlu0 %157, %v154
        %v159 = vpop.permute.xlu0 %158
        %vm160 = vcmp.eq.s32.totalorder %v159, %v156
        %161 = vset.pattern.permute.xlu0 1
        %162 = vperm.xlu0 %161, %v154
        %v163 = vpop.permute.xlu0 %162
        %vm164 = vcmp.eq.s32.totalorder %v163, %v156
        %vm165 = vmor %vm160, %vm164
        %166 = vset.pattern.permute.xlu0 2
        %167 = vperm.xlu0 %166, %v154
        %v168 = vpop.permute.xlu0 %167
        %vm169 = vcmp.eq.s32.totalorder %v168, %v156
        %vm170 = vmor %vm165, %vm169
        %v171 = vsel %vm170, 1, 0
        %v172 = vcvt.s32.f32 %v171
        %v173 = vld [vmem:[#allocation2] sm:$0xff]
        %v174 = vld [vmem:[#allocation2 + $0x8] sm:$0xff]
        %v175 = vld [vmem:[#allocation2 + $0x10] sm:$0xff]
        %v176 = vld [vmem:[#allocation2 + $0x18] sm:$0xff]
        %v177 = vld [vmem:[#allocation2 + $0x20] sm:$0xff]
        %v178 = vld [vmem:[#allocation2 + $0x28] sm:$0xff]
        %v179 = vld [vmem:[#allocation2 + $0x30] sm:$0xff]
        %v180 = vld [vmem:[#allocation2 + $0x38] sm:$0xff]
        %v181 = vld [vmem:[#allocation2 + $0x40] sm:$0xff]
        %v182 = vld [vmem:[#allocation2 + $0x48] sm:$0xff]
        %v183 = vld [vmem:[#allocation2 + $0x50] sm:$0xff]
        %v184 = vld [vmem:[#allocation2 + $0x58] sm:$0xff]
        %v185 = vld [vmem:[#allocation2 + $0x60] sm:$0xff]
        %v186 = vld [vmem:[#allocation2 + $0x68] sm:$0xff]
        %v187 = vld [vmem:[#allocation2 + $0x70] sm:$0xff]
        %v188 = vld [vmem:[#allocation2 + $0x78] sm:$0xff]
        %189 = vmatprep.subr.mxu0 0.0
        %190 = vmatpush1.msra.mxu0 %v173
        %191 = vmatprep.subr.mxu0 0.0
        %192 = vmatpush1.msra.mxu0 %v174
        %193 = vmatprep.subr.mxu0 0.0
        %194 = vmatpush1.msra.mxu0 %v175
        %195 = vmatprep.subr.mxu0 0.0
        %196 = vmatpush1.msra.mxu0 %v176
        %197 = vmatprep.subr.mxu0 0.0
        %198 = vmatpush1.msra.mxu0 %v177
        %199 = vmatprep.subr.mxu0 0.0
        %200 = vmatpush1.msra.mxu0 %v178
        %201 = vmatprep.subr.mxu0 0.0
        %202 = vmatpush1.msra.mxu0 %v179
        %203 = vmatprep.subr.mxu0 0.0
        %204 = vmatpush1.msra.mxu0 %v180
        %205 = vmatprep.subr.mxu0 0.0
        %206 = vmatpush1.msra.mxu0 %v181
        %207 = vmatprep.subr.mxu0 0.0
        %208 = vmatpush1.msra.mxu0 %v182
        %209 = vmatprep.subr.mxu0 0.0
        %210 = vmatpush1.msra.mxu0 %v183
        %211 = vmatprep.subr.mxu0 0.0
        %212 = vmatpush1.msra.mxu0 %v184
        %213 = vmatprep.subr.mxu0 0.0
        %214 = vmatpush1.msra.mxu0 %v185
        %215 = vmatprep.subr.mxu0 0.0
        %216 = vmatpush1.msra.mxu0 %v186
        %217 = vmatprep.subr.mxu0 0.0
        %218 = vmatpush1.msra.mxu0 %v187
        %219 = vmatprep.subr.mxu0 0.0
        %220 = vmatpush1.msra.mxu0 %v188
        %221 = vmatprep.subr.mxu0 0.0
        %222 = vmatpush1.msra.mxu0 0.0
        %223 = vmatprep.subr.mxu0 0.0
        %224 = vmatpush1.msra.mxu0 0.0
        %225 = vmatprep.subr.mxu0 0.0
        %226 = vmatpush1.msra.mxu0 0.0
        %227 = vmatprep.subr.mxu0 0.0
        %228 = vmatpush1.msra.mxu0 0.0
        %229 = vmatprep.subr.mxu0 0.0
        %230 = vmatpush1.msra.mxu0 0.0
        %231 = vmatprep.subr.mxu0 0.0
        %232 = vmatpush1.msra.mxu0 0.0
        %233 = vmatprep.subr.mxu0 0.0
        %234 = vmatpush1.msra.mxu0 0.0
        %235 = vmatprep.subr.mxu0 0.0
        %236 = vmatpush1.msra.mxu0 0.0
        %237 = vmatprep.subr.mxu0 0.0
        %238 = vmatpush1.msra.mxu0 0.0
        %239 = vmatprep.subr.mxu0 0.0
        %240 = vmatpush1.msra.mxu0 0.0
        %241 = vmatprep.subr.mxu0 0.0
        %242 = vmatpush1.msra.mxu0 0.0
        %243 = vmatprep.subr.mxu0 0.0
        %244 = vmatpush1.msra.mxu0 0.0
        %245 = vmatprep.subr.mxu0 0.0
        %246 = vmatpush1.msra.mxu0 0.0
        %247 = vmatprep.subr.mxu0 0.0
        %248 = vmatpush1.msra.mxu0 0.0
        %249 = vmatprep.subr.mxu0 0.0
        %250 = vmatpush1.msra.mxu0 0.0
        %251 = vmatprep.subr.mxu0 0.0
        %252 = vmatpush1.msra.mxu0 0.0
        %253 = vmatprep.mubr.f32.mxu0 0.0
        %254 = vmatmul.mubr.f32.gmra.mrb[0].mxu0 %v172
        %v255 = vpop.f32.mrb[0].mxu0
        %v256 = vadd.f32 0.0, %v255
        %v257 = vpop.f32.mrb[0].mxu0
        %258 = vdwg.mxu0
        %259 = vst [vmem:[%s149] sm:$0xff] %v256
        %s260 = sand.u32 %s72, 1
        %s261 = scalar_lea.sflag [#allocation4], %s260
        %s262 = sand.u32 %s72, 1
        %s263 = smul.addr %s262, 8
        %s264 = scalar_lea.vmem [#allocation5], %s263
        // Predicated region
        $region33: #{tpu_custom_call.1} parent=27 // pred_check
          %p265 = pneg %p82
        $region34: #{tpu_custom_call.1} parent=27 // pred_check_branch
          %267 = sbr.rel (%p265) target = $region36
        $region35: #{tpu_custom_call.1} parent=27 // pred_region
          %s269 = ssub.s32 128, 128
          %270 = vsyncadd %s261, %s269
          %s271 = smul.addr %s17, 128
          %s272 = scalar_lea.hbm %s2, %s271
          %s274 = sshll.u32 %s264, 4
          %s275 = int_to_ptr.vmem [resolvable:$true] %s274
          %277 = dma.vmem_to_hbm [thread:$0]  %s275, 128, %s272, %s261
        $region36: #{tpu_custom_call.1} parent=27 // pred_fallthru
          _
      $region28: #{tpu_custom_call.1} parent=5 // pred_fallthru
        _
      %p278 = scmp.le.s32.totalorder 2, %s12
      // Predicated region
      $region37: #{tpu_custom_call.1} parent=5 // pred_check
        %p279 = pneg %p278
      $region38: #{tpu_custom_call.1} parent=5 // pred_check_branch
        %281 = sbr.rel (%p279) target = $region40
      $region39: #{tpu_custom_call.1} parent=5 // pred_region
        %s282 = ssub.s32 %s12, 2
        // Predicated region
        $region41: #{tpu_custom_call.1} parent=39 // pred_check
          %p283 = pneg %p88
        $region42: #{tpu_custom_call.1} parent=39 // pred_check_branch
          %285 = sbr.rel (%p283) target = $region44
        $region43: #{tpu_custom_call.1} parent=39 // pred_region
          %s286 = sand.u32 %s73, 1
          %s287 = scalar_lea.sflag [#allocation4], %s286
          %s288 = sand.u32 %s73, 1
          %s289 = smul.addr %s288, 8
          %s290 = scalar_lea.vmem [#allocation5], %s289
          %291 = dma.done %s287, 128
        $region44: #{tpu_custom_call.1} parent=39 // pred_fallthru
          _
      $region40: #{tpu_custom_call.1} parent=5 // pred_fallthru
        _
    $region6: #{tpu_custom_call.1} parent=1 // loop_footer
      %s16 = sadd.s32 1, %s12
    $region7: #{tpu_custom_call.1} parent=1 // loop_footer_branch
      %11 = sbr.rel target = $region3
    $region8: #{tpu_custom_call.1} parent=1 // loop_exit
      _
    %292 = vsyncpa [#allocation3], 1
    %s293 = scalar_lea.sflag [#allocation3], 1
    %294 = vsyncpa %s293, 1
    %295 = vsyncpa [#allocation4], 1
    %s296 = scalar_lea.sflag [#allocation4], 1
    %297 = vsyncpa %s296, 1

</llo_original>
